<compile_context>
chip_gen: v6e
topology: v6e:2x2x1
jax: 0.10.0
libtpu: 0.0.40
codegen_flags: <defaults>
</compile_context>

<pallas_src>
import jax
import jax.numpy as jnp
from jax.experimental import pallas as pl
from jax.experimental.pallas import tpu as pltpu

_VMEM_LIMIT = 64 * 1024 * 1024


def _round_up(x, m):
    return (x + m - 1) // m * m


# ----------------------- Kernel 1/3: tiled matmul + bias ----------------------- #
def _linear_kernel(x_ref, w_ref, b_ref, o_ref):
    # x_ref: (tm, K) bf16   w_ref: (K, tn) bf16   b_ref: (1, tn) f32   o_ref: (tm, tn)
    acc = jnp.dot(x_ref[...], w_ref[...], preferred_element_type=jnp.float32)
    o_ref[...] = (acc + b_ref[...]).astype(o_ref.dtype)


def _linear(x, w_bf16, b_row, *, out_dtype, tm_target=256, tn_target=1536):
    """x: (M, K) @ w: (K, N) + b: (1, N) -> (M, N). bf16 MXU operands, fp32 accumulate."""
    M, K = x.shape
    N = w_bf16.shape[1]
    tm = min(tm_target, _round_up(M, 8))
    m_pad = _round_up(M, tm)
    xp = x.astype(jnp.bfloat16)
    if m_pad != M:
        xp = jnp.pad(xp, ((0, m_pad - M), (0, 0)))
    # N tiling keeps the resident weight slab small (helps v5e's 16 MiB scoped VMEM).
    tn = N
    if N > tn_target:
        for cand in range(tn_target, 127, -128):
            if N % cand == 0:
                tn = cand
                break
        # TODO(synk): pad N when it has no multiple-of-128 divisor <= tn_target.
    grid = (m_pad // tm, N // tn)

    cost = pl.CostEstimate(
        flops=2 * m_pad * K * N,
        transcendentals=0,
        bytes_accessed=int(m_pad * K * 2 + K * N * 2 + N * 4
                           + m_pad * N * jnp.dtype(out_dtype).itemsize),
    )
    out = pl.pallas_call(
        _linear_kernel,
        out_shape=jax.ShapeDtypeStruct((m_pad, N), out_dtype),
        grid=grid,
        in_specs=[
            pl.BlockSpec((tm, K), lambda i, j: (i, 0)),
            pl.BlockSpec((K, tn), lambda i, j: (0, j)),
            pl.BlockSpec((1, tn), lambda i, j: (0, j)),
        ],
        out_specs=pl.BlockSpec((tm, tn), lambda i, j: (i, j)),
        compiler_params=pltpu.CompilerParams(
            dimension_semantics=("parallel", "parallel"),
            vmem_limit_bytes=_VMEM_LIMIT),
        cost_estimate=cost,
    )(xp, w_bf16, b_row)
    return out[:M] if m_pad != M else out


# -------------------------- Kernel 2: fused attention core ------------------------- #
def _make_attn_kernel(scale, has_bias, has_weights):
    def kernel(*refs):
        it = iter(refs)
        q_ref = next(it)
        k_ref = next(it)
        v_ref = next(it)
        rh_ref = next(it) if has_bias else None
        rw_ref = next(it) if has_bias else None
        o_ref = next(it)
        w_ref = next(it) if has_weights else None

        q = q_ref[0] * scale                 # scale the (tq, hd) tile, not the (tq, S) scores
        k = k_ref[0]
        v = v_ref[0]
        # scores = q @ k^T (contract head_dim), fp32 accumulation on the MXU
        scores = jax.lax.dot_general(
            q, k, dimension_numbers=(((1,), (1,)), ((), ())),
            preferred_element_type=jnp.float32)
        if has_bias:
            rel_h = rh_ref[0]                # (tq, H) f32
            rel_w = rw_ref[0]                # (tq, W) f32
            tq, h_dim = rel_h.shape
            w_dim = rel_w.shape[1]
            # Decomposed rel-pos bias built fully in VMEM; never materialized in HBM.
            bias = (rel_h[:, :, None] + rel_w[:, None, :]).reshape(tq, h_dim * w_dim)
            scores = scores + bias
        # softmax over the full key axis (resident in this block), fp32
        m = jnp.max(scores, axis=-1, keepdims=True)
        p = jnp.exp(scores - m)
        denom = jnp.sum(p, axis=-1, keepdims=True)
        probs = p * pl.reciprocal(denom, approx=True)   # divide on the EUP slot
        if has_weights:
            w_ref[0] = probs.astype(w_ref.dtype)
        out = jnp.dot(probs.astype(v.dtype), v, preferred_element_type=jnp.float32)
        o_ref[0] = out.astype(o_ref.dtype)
        # TODO(synk): for head_dim < 128 the output block is not lane-dense; fold the heads
        # back into a (B, S, D)-wide out_spec once sub-128-lane block offsets are acceptable.

    return kernel


def _attention(q, k, v, rel_h, rel_w, *, scale, output_attentions, tq_target=256):
    """q, k, v: (BH, S, hd) bf16; rel_h: (BH, S, H) f32 or None; rel_w: (BH, S, W) f32 or None."""
    BH, S, hd = q.shape
    has_bias = rel_h is not None
    # Query-block tile: full (rounded) S for small sequences, else tq_target (multiple of 8).
    tq = _round_up(S, 8) if S <= tq_target else tq_target
    s_pad = _round_up(S, tq)
    if s_pad != S:
        # Pad only the query axis: padded rows produce finite softmax rows we simply drop,
        # so no key masking is needed (key axis stays exactly S).
        qpad = ((0, 0), (0, s_pad - S), (0, 0))
        q = jnp.pad(q, qpad)
        if has_bias:
            rel_h = jnp.pad(rel_h, qpad)
            rel_w = jnp.pad(rel_w, qpad)

    in_arrays = [q, k, v]
    in_specs = [
        pl.BlockSpec((1, tq, hd), lambda b, i: (b, i, 0)),
        pl.BlockSpec((1, S, hd), lambda b, i: (b, 0, 0)),
        pl.BlockSpec((1, S, hd), lambda b, i: (b, 0, 0)),
    ]
    if has_bias:
        h_dim = rel_h.shape[-1]
        w_dim = rel_w.shape[-1]
        in_arrays += [rel_h, rel_w]
        in_specs += [
            pl.BlockSpec((1, tq, h_dim), lambda b, i: (b, i, 0)),
            pl.BlockSpec((1, tq, w_dim), lambda b, i: (b, i, 0)),
        ]

    out_shapes = [jax.ShapeDtypeStruct((BH, s_pad, hd), jnp.bfloat16)]
    out_specs = [pl.BlockSpec((1, tq, hd), lambda b, i: (b, i, 0))]
    if output_attentions:
        out_shapes.append(jax.ShapeDtypeStruct((BH, s_pad, S), jnp.float32))
        out_specs.append(pl.BlockSpec((1, tq, S), lambda b, i: (b, i, 0)))

    bias_bytes = (rel_h.size + rel_w.size) * 4 if has_bias else 0
    weight_bytes = BH * s_pad * S * 4 if output_attentions else 0
    cost = pl.CostEstimate(
        flops=4 * BH * s_pad * S * hd,
        transcendentals=BH * s_pad * S,
        bytes_accessed=int((q.size + k.size + v.size) * 2 + bias_bytes
                           + BH * s_pad * hd * 2 + weight_bytes),
    )

    kernel = _make_attn_kernel(scale, has_bias, output_attentions)
    res = pl.pallas_call(
        kernel,
        out_shape=tuple(out_shapes) if len(out_shapes) > 1 else out_shapes[0],
        grid=(BH, s_pad // tq),
        in_specs=in_specs,
        out_specs=tuple(out_specs) if len(out_specs) > 1 else out_specs[0],
        compiler_params=pltpu.CompilerParams(
            dimension_semantics=("parallel", "parallel"),
            vmem_limit_bytes=_VMEM_LIMIT),
        cost_estimate=cost,
    )(*in_arrays)

    if output_attentions:
        out, weights = res
        if s_pad != S:
            out = out[:, :S, :]
            weights = weights[:, :S, :]
        return out, weights
    out = res
    if s_pad != S:
        out = out[:, :S, :]
    return out, None


# ------------------------------ rel-pos helper (glue) ------------------------------ #
def _rel_pos_table(q_size, k_size, rel_pos):
    """Gathered relative-position table (q_size, k_size, head_dim).

    Matches SamVisionAttention.get_rel_pos when rel_pos already holds 2*max(q,k)-1 entries
    (the F.interpolate call is then the identity).
    """
    max_rel_dist = 2 * max(q_size, k_size) - 1
    assert rel_pos.shape[0] == max_rel_dist
    # TODO(synk): linear re-interpolation path (rel_pos length != 2*max(q,k)-1) not implemented.
    q_coords = jnp.arange(q_size)[:, None] * max(k_size / q_size, 1.0)
    k_coords = jnp.arange(k_size)[None, :] * max(q_size / k_size, 1.0)
    rel_coords = q_coords - k_coords + (k_size - 1) * max(q_size / k_size, 1.0)
    return rel_pos[rel_coords.astype(jnp.int32)]


# --------------------------------- Module wrapper ---------------------------------- #
class SamVisionAttentionPallas:
    """JAX/Pallas equivalent of transformers SamVisionAttention (eval-mode forward)."""

    def __init__(self, hidden_size, num_attention_heads, input_size, *,
                 qkv_bias=True, use_rel_pos=True, key=None):
        self.hidden_size = hidden_size
        self.num_attention_heads = num_attention_heads
        self.head_dim = hidden_size // num_attention_heads
        self.scale = self.head_dim ** (-0.5)
        self.input_size = tuple(input_size)
        self.use_rel_pos = use_rel_pos

        k1, k2, k3, k4, k5, k6 = jax.random.split(key, 6)
        std = 0.05
        D = hidden_size
        # fp32 master weights (for the reference) in (K, N) layout.
        self.w_qkv = jax.random.normal(k1, (D, 3 * D), jnp.float32) * std
        self.b_qkv = (jax.random.normal(k2, (3 * D,), jnp.float32) * std
                      if qkv_bias else jnp.zeros((3 * D,), jnp.float32))
        self.w_proj = jax.random.normal(k3, (D, D), jnp.float32) * std
        self.b_proj = jax.random.normal(k4, (D,), jnp.float32) * std
        # Static kernel operands pre-cast ONCE (no per-forward weight casts / HBM round-trips).
        self.w_qkv_bf16 = self.w_qkv.astype(jnp.bfloat16)
        self.b_qkv_row = self.b_qkv.reshape(1, -1).astype(jnp.float32)
        self.w_proj_bf16 = self.w_proj.astype(jnp.bfloat16)
        self.b_proj_row = self.b_proj.reshape(1, -1).astype(jnp.float32)

        if use_rel_pos:
            Hs, Ws = self.input_size
            self.rel_pos_h = jax.random.normal(k5, (2 * Hs - 1, self.head_dim), jnp.float32) * std
            self.rel_pos_w = jax.random.normal(k6, (2 * Ws - 1, self.head_dim), jnp.float32) * std
            # Gathered (q, k, head_dim) tables precomputed once (input_size is static).
            self.rel_h_table = _rel_pos_table(Hs, Hs, self.rel_pos_h).astype(jnp.bfloat16)
            self.rel_w_table = _rel_pos_table(Ws, Ws, self.rel_pos_w).astype(jnp.bfloat16)

    def __call__(self, hidden_states, output_attentions=True):
        B, H, W, D = hidden_states.shape
        nh, hd = self.num_attention_heads, self.head_dim
        S = H * W

        # --- QKV projection (Pallas, bf16 output: every consumer wants bf16 anyway) ---
        x = hidden_states.reshape(B * S, D)
        qkv = _linear(x, self.w_qkv_bf16, self.b_qkv_row, out_dtype=jnp.bfloat16)  # (B*S, 3D)

        # Head split (XLA glue; matches torch .reshape(...).permute(2,0,3,1,4)).
        # TODO(synk): fold this transpose into column-offset BlockSpecs on the (B, S, 3D)
        # buffer (and write the attention output straight into (B, S, D)) once sub-128-lane
        # block offsets are acceptable for head_dim < 128.
        qkv = qkv.reshape(B, S, 3, nh, hd)
        qkv = jnp.transpose(qkv, (2, 0, 3, 1, 4)).reshape(3, B * nh, S, hd)
        q, k, v = qkv[0], qkv[1], qkv[2]                                  # bf16

        # --- decomposed relative-position terms (small einsums, XLA glue) ---
        if self.use_rel_pos:
            q_r = q.reshape(B * nh, H, W, hd)
            rel_h = jnp.einsum("bhwc,hkc->bhwk", q_r, self.rel_h_table,
                               preferred_element_type=jnp.float32).reshape(B * nh, S, H)
            rel_w = jnp.einsum("bhwc,wkc->bhwk", q_r, self.rel_w_table,
                               preferred_element_type=jnp.float32).reshape(B * nh, S, W)
        else:
            rel_h = rel_w = None

        # --- fused attention core (Pallas: QK^T, in-kernel rel-pos bias, softmax, PV) ---
        attn_out, attn_weights = _attention(
            q, k, v, rel_h, rel_w, scale=self.scale, output_attentions=output_attentions)

        # --- merge heads + output projection (Pallas) ---
        attn_out = attn_out.reshape(B, nh, H, W, hd)
        attn_out = jnp.transpose(attn_out, (0, 2, 3, 1, 4)).reshape(B * S, D)
        out = _linear(attn_out, self.w_proj_bf16, self.b_proj_row,
                      out_dtype=jnp.float32).reshape(B, H, W, D)

        # TODO(synk): attention dropout (training mode) not implemented; eval-mode forward.
        return out, attn_weights


# -------------------------------- Reference (pure JAX) ------------------------------ #
def _reference(hidden_states, w_qkv, b_qkv, w_proj, b_proj,
               rel_pos_h, rel_pos_w, num_heads, scale, use_rel_pos=True):
    B, H, W, D = hidden_states.shape
    nh = num_heads
    hd = D // nh
    S = H * W
    x = hidden_states.reshape(B, S, D)
    qkv = x @ w_qkv + b_qkv
    qkv = qkv.reshape(B, S, 3, nh, hd)
    qkv = jnp.transpose(qkv, (2, 0, 3, 1, 4)).reshape(3, B * nh, S, hd)
    q, k, v = qkv[0], qkv[1], qkv[2]
    attn = jnp.einsum("bqd,bkd->bqk", q * scale, k)
    if use_rel_pos:
        Rh = _rel_pos_table(H, H, rel_pos_h)
        Rw = _rel_pos_table(W, W, rel_pos_w)
        q_r = q.reshape(B * nh, H, W, hd)
        rel_h = jnp.einsum("bhwc,hkc->bhwk", q_r, Rh)
        rel_w = jnp.einsum("bhwc,wkc->bhwk", q_r, Rw)
        attn = attn + (rel_h[..., :, None] + rel_w[..., None, :]).reshape(B * nh, S, S)
    attn = jax.nn.softmax(attn.astype(jnp.float32), axis=-1)
    out = jnp.einsum("bqk,bkd->bqd", attn, v)
    out = out.reshape(B, nh, H, W, hd)
    out = jnp.transpose(out, (0, 2, 3, 1, 4)).reshape(B, S, D)
    out = out @ w_proj + b_proj
    return out.reshape(B, H, W, D), attn


if __name__ == "__main__":
    key = jax.random.PRNGKey(0)
    k_param, k_x = jax.random.split(key)

    # Small, forward-consistent config: batch=2, 8x8 tokens, hidden=32, 2 heads (head_dim=16).
    batch, height, width, hidden, heads = 2, 8, 8, 32, 2

    module = SamVisionAttentionPallas(
        hidden_size=hidden, num_attention_heads=heads, input_size=(height, width),
        qkv_bias=True, use_rel_pos=True, key=k_param,
    )
    hidden_states = jax.random.normal(k_x, (batch, height, width, hidden), jnp.float32)

    # Full path (returns attention weights, matching the HF module's default behaviour).
    attn_out, attn_weights = module(hidden_states, output_attentions=True)
    attn_out = jax.block_until_ready(attn_out)
    attn_weights = jax.block_until_ready(attn_weights)

    # Fast path (no (BH, S, S) weights writeback) must also compile and run.
    out_fast, w_none = module(hidden_states, output_attentions=False)
    out_fast = jax.block_until_ready(out_fast)
    assert w_none is None

    ref_out, ref_weights = _reference(
        hidden_states, module.w_qkv, module.b_qkv, module.w_proj, module.b_proj,
        module.rel_pos_h, module.rel_pos_w, heads, module.scale, use_rel_pos=True,
    )

    assert attn_out.shape == (batch, height, width, hidden), attn_out.shape
    assert attn_weights.shape == (batch * heads, height * width, height * width), attn_weights.shape
    err_o = float(jnp.max(jnp.abs(attn_out - ref_out)))
    err_w = float(jnp.max(jnp.abs(attn_weights - ref_weights)))
    err_f = float(jnp.max(jnp.abs(out_fast - ref_out)))
    # bf16 MXU operands / bf16 intermediates with fp32 accumulation, approx reciprocal
    # in the softmax -> loose-but-meaningful tolerance vs the fp32 reference.
    assert jnp.allclose(attn_out, ref_out, atol=2e-2, rtol=2e-2), err_o
    assert jnp.allclose(attn_weights, ref_weights, atol=2e-2, rtol=2e-2), err_w
    assert jnp.allclose(out_fast, ref_out, atol=2e-2, rtol=2e-2), err_f

    print("KERNEL_OK")
</pallas_src>

<mosaic_0001>
module attributes {stable_mosaic.version = 11 : i64} {
  func.func @_linear_kernel(%arg0: i32, %arg1: i32, %arg2: memref<128x32xbf16, #tpu.memory_space<vmem>>, %arg3: memref<32x96xbf16, #tpu.memory_space<vmem>>, %arg4: memref<1x96xf32, #tpu.memory_space<vmem>>, %arg5: memref<128x96xbf16, #tpu.memory_space<vmem>>) attributes {dimension_semantics = [#tpu.dimension_semantics<parallel>, #tpu.dimension_semantics<parallel>], iteration_bounds = array<i64: 1, 1>, scalar_prefetch = 0 : i64, scratch_operands = 0 : i64, tpu.core_type = #tpu.core_type<tc>, window_params = [{transform_indices = @transform_0, window_bounds = array<i64: 128, 32>}, {transform_indices = @transform_1, window_bounds = array<i64: 32, 96>}, {transform_indices = @transform_2, window_bounds = array<i64: 1, 96>}, {transform_indices = @transform_3, window_bounds = array<i64: 128, 96>}]} {
    %c0 = arith.constant 0 : index
    %c0_0 = arith.constant 0 : index
    %0 = vector.load %arg2[%c0, %c0_0] : memref<128x32xbf16, #tpu.memory_space<vmem>>, vector<128x32xbf16>
    %c0_1 = arith.constant 0 : index
    %c0_2 = arith.constant 0 : index
    %1 = vector.load %arg3[%c0_1, %c0_2] : memref<32x96xbf16, #tpu.memory_space<vmem>>, vector<32x96xbf16>
    %cst = arith.constant dense<0.000000e+00> : vector<128x96xf32>
    %2 = tpu.matmul %0, %1, %cst {dimension_numbers = #tpu.dot_dimension_numbers<[1], [0], [0], [1], [0, 0, 1, 1], [], []>} : vector<128x32xbf16>, vector<32x96xbf16>, vector<128x96xf32> -> vector<128x96xf32>
    %c0_3 = arith.constant 0 : index
    %c0_4 = arith.constant 0 : index
    %3 = vector.load %arg4[%c0_3, %c0_4] : memref<1x96xf32, #tpu.memory_space<vmem>>, vector<1x96xf32>
    %4 = vector.broadcast %3 : vector<1x96xf32> to vector<128x96xf32>
    %5 = arith.addf %2, %4 : vector<128x96xf32>
    %6 = arith.truncf %5 : vector<128x96xf32> to vector<128x96xbf16>
    %c0_5 = arith.constant 0 : index
    %c0_6 = arith.constant 0 : index
    %7 = vector.load %arg5[%c0_5, %c0_6] : memref<128x96xbf16, #tpu.memory_space<vmem>>, vector<128x96xbf16>
    tpu.vector_store %arg5[%c0_5, %c0_6], %6 {strides = array<i32>} : memref<128x96xbf16, #tpu.memory_space<vmem>>, vector<128x96xbf16>,
    return
  }
  func.func @transform_0(%arg0: i32, %arg1: i32) -> (i32, i32) {
    %c0_i32 = arith.constant 0 : i32
    %c0_i32_0 = arith.constant 0 : i32
    return %arg0, %c0_i32 : i32, i32
  }
  func.func @transform_1(%arg0: i32, %arg1: i32) -> (i32, i32) {
    %c0_i32 = arith.constant 0 : i32
    %c0_i32_0 = arith.constant 0 : i32
    return %c0_i32, %arg1 : i32, i32
  }
  func.func @transform_2(%arg0: i32, %arg1: i32) -> (i32, i32) {
    %c0_i32 = arith.constant 0 : i32
    %c0_i32_0 = arith.constant 0 : i32
    return %c0_i32, %arg1 : i32, i32
  }
  func.func @transform_3(%arg0: i32, %arg1: i32) -> (i32, i32) {
    %c0_i32 = arith.constant 0 : i32
    return %arg0, %arg1 : i32, i32
  }
}

</mosaic_0001>

<llo_original>
// kernel: tpu_custom_call.1
$region0: #{tpu_custom_call.1}
  #allocation0 [shape = 'u32[]', space=smem, size = 0x4, offset = 0x4, fixed_abs, tag = 'smem constant byte address 0x4 - core index']
  #allocation1 [shape = 'u32[144,128]{1,0:T(1,128)}', space=vmem, size = 0x12000, scoped, tag = 'internal scratch']
  %s0 = inlined_call_operand.vmem [shape: bf16[128,32], index: 0, kind: input, shape index: {}]
  %s1 = inlined_call_operand.vmem [shape: bf16[32,96], index: 1, kind: input, shape index: {}]
  %s2 = inlined_call_operand.vmem [shape: f32[1,96], index: 2, kind: input, shape index: {}]
  %s3 = inlined_call_operand.vmem [shape: bf16[128,96], index: 3, kind: output, shape index: {}]
  %s4 = sld [smem:[#allocation0]]
  $region22: #{tpu_custom_call.1} parent=0
    _
  %s6 = ssub.s32 1, %s4
  %s7 = scalar_select 0, %s6, %s4
  // Predicated region
  $region2: #{tpu_custom_call.1} parent=0 // pred_check
    _
  $region3: #{tpu_custom_call.1} parent=0 // pred_check_branch
    %9 = sbr.rel (0) target = $region5
  $region4: #{tpu_custom_call.1} parent=0 // pred_region
    _
  $region5: #{tpu_custom_call.1} parent=0 // pred_fallthru
    _
  // Predicated region
  $region6: #{tpu_custom_call.1} parent=0 // pred_check
    _
  $region7: #{tpu_custom_call.1} parent=0 // pred_check_branch
    %11 = sbr.rel (0) target = $region9
  $region8: #{tpu_custom_call.1} parent=0 // pred_region
    _
  $region9: #{tpu_custom_call.1} parent=0 // pred_fallthru
    _
  // Predicated region
  $region10: #{tpu_custom_call.1} parent=0 // pred_check
    _
  $region11: #{tpu_custom_call.1} parent=0 // pred_check_branch
    %13 = sbr.rel (0) target = $region13
  $region12: #{tpu_custom_call.1} parent=0 // pred_region
    _
  $region13: #{tpu_custom_call.1} parent=0 // pred_fallthru
    _
  %v15 = vld [vmem:[%s0] sm:$0xf]
  %v16 = vld [vmem:[%s0 + $0x4] sm:$0xf]
  %v17 = vld [vmem:[%s0 + $0x8] sm:$0xf]
  %v18 = vld [vmem:[%s0 + $0xc] sm:$0xf]
  %v19 = vld [vmem:[%s0 + $0x10] sm:$0xf]
  %v20 = vld [vmem:[%s0 + $0x14] sm:$0xf]
  %v21 = vld [vmem:[%s0 + $0x18] sm:$0xf]
  %v22 = vld [vmem:[%s0 + $0x1c] sm:$0xf]
  %v23 = vld [vmem:[%s0 + $0x20] sm:$0xf]
  %v24 = vld [vmem:[%s0 + $0x24] sm:$0xf]
  %v25 = vld [vmem:[%s0 + $0x28] sm:$0xf]
  %v26 = vld [vmem:[%s0 + $0x2c] sm:$0xf]
  %v27 = vld [vmem:[%s0 + $0x30] sm:$0xf]
  %v28 = vld [vmem:[%s0 + $0x34] sm:$0xf]
  %v29 = vld [vmem:[%s0 + $0x38] sm:$0xf]
  %v30 = vld [vmem:[%s0 + $0x3c] sm:$0xf]
  %v31 = vld [vmem:[%s1] sm:$0xf]
  %v32 = vld [vmem:[%s1 + $0x4] sm:$0xf]
  %v33 = vld [vmem:[%s1 + $0x8] sm:$0xf]
  %v34 = vld [vmem:[%s1 + $0xc] sm:$0xf]
  %v35 = vld [vmem:[%s2] sm:$0x1]
  %v37 = vlaneseq
  %v38 = vshrl.u32 %v37, 7
  %v39 = vsub.s32 0, %v38
  %v40 = vrot.slane %v35, %v39
  %v58 = vunpack.c.l.b16 %v15
  %v59 = vunpack.c.l.b16 %v16
  %v60 = vunpack.c.l.b16 %v17
  %v61 = vunpack.c.l.b16 %v18
  %v62 = vunpack.c.l.b16 %v19
  %v63 = vunpack.c.l.b16 %v20
  %v64 = vunpack.c.l.b16 %v21
  %v65 = vunpack.c.l.b16 %v22
  %v66 = vunpack.c.l.b16 %v23
  %v67 = vunpack.c.l.b16 %v24
  %v68 = vunpack.c.l.b16 %v25
  %v69 = vunpack.c.l.b16 %v26
  %v70 = vunpack.c.l.b16 %v27
  %v71 = vunpack.c.l.b16 %v28
  %v72 = vunpack.c.l.b16 %v29
  %v73 = vunpack.c.l.b16 %v30
  %v74 = vpack.c.b16 %v59, %v58
  %v75 = vpack.c.b16 %v61, %v60
  %v76 = vpack.c.b16 %v63, %v62
  %v77 = vpack.c.b16 %v65, %v64
  %v78 = vpack.c.b16 %v67, %v66
  %v79 = vpack.c.b16 %v69, %v68
  %v80 = vpack.c.b16 %v71, %v70
  %v81 = vpack.c.b16 %v73, %v72
  %v86 = vunpack.c.l.b16 %v31
  %v87 = vunpack.c.l.b16 %v32
  %v88 = vunpack.c.l.b16 %v33
  %v89 = vunpack.c.l.b16 %v34
  %v90 = vpack.c.b16 %v87, %v86
  %v91 = vpack.c.b16 %v89, %v88
  %vm94 = vcmask 261120
  %v96 = vsel %vm94, %v74, 0
  %v99 = vsel %vm94, %v75, 0
  %v102 = vsel %vm94, %v76, 0
  %v105 = vsel %vm94, %v77, 0
  %v108 = vsel %vm94, %v78, 0
  %v111 = vsel %vm94, %v79, 0
  %v114 = vsel %vm94, %v80, 0
  %v117 = vsel %vm94, %v81, 0
  %119 = vmatprep.subr.bf16.mxu0 0
  %120 = vmatpush1.bf16.msra.mxu0 0
  %121 = vmatprep.subr.bf16.mxu0 0
  %122 = vmatpush1.bf16.msra.mxu0 0
  %123 = vmatprep.subr.bf16.mxu0 0
  %124 = vmatpush1.bf16.msra.mxu0 0
  %125 = vmatprep.subr.bf16.mxu0 0
  %126 = vmatpush1.bf16.msra.mxu0 0
  %127 = vmatprep.subr.bf16.mxu0 0
  %128 = vmatpush1.bf16.msra.mxu0 0
  %129 = vmatprep.subr.bf16.mxu0 0
  %130 = vmatpush1.bf16.msra.mxu0 0
  %131 = vmatprep.subr.bf16.mxu0 0
  %132 = vmatpush1.bf16.msra.mxu0 %v91
  %133 = vmatprep.subr.bf16.mxu0 0
  %134 = vmatpush1.bf16.msra.mxu0 %v90
  %135 = vmatprep.subr.bf16.mxu0 0
  %136 = vmatpush2.bf16.msra.mxu0 0
  %137 = vmatprep.subr.bf16.mxu0 0
  %138 = vmatpush2.bf16.msra.mxu0 0
  %139 = vmatprep.subr.bf16.mxu0 0
  %140 = vmatpush2.bf16.msra.mxu0 0
  %141 = vmatprep.subr.bf16.mxu0 0
  %142 = vmatpush2.bf16.msra.mxu0 0
  %143 = vmatprep.subr.bf16.mxu0 0
  %144 = vmatpush2.bf16.msra.mxu0 0
  %145 = vmatprep.subr.bf16.mxu0 0
  %146 = vmatpush2.bf16.msra.mxu0 0
  %147 = vmatprep.subr.bf16.mxu0 0
  %148 = vmatpush2.bf16.msra.mxu0 0
  %149 = vmatprep.subr.bf16.mxu0 0
  %150 = vmatpush2.bf16.msra.mxu0 0
  %151 = vmatprep.mubr.bf16.mxu0 0
  %152 = vmatmul.mubr.bf16.gmra.mxu0 %v96
  %v153 = vpop.f32.mrf.mxu0
  %v154 = vadd.f32 %v40, %v153
  %v155 = vpop.f32.mrf.mxu0
  %v156 = vpop.f32.mrf.mxu0
  %v157 = vadd.f32 %v40, %v156
  %v158 = vpop.f32.mrf.mxu0
  %159 = vmatprep.mubr.bf16.mxu0 0
  %160 = vmatmul.mubr.bf16.gmra.mxu0 %v99
  %v161 = vpop.f32.mrf.mxu0
  %v162 = vadd.f32 %v40, %v161
  %v163 = vpop.f32.mrf.mxu0
  %v164 = vpop.f32.mrf.mxu0
  %v165 = vadd.f32 %v40, %v164
  %v166 = vpop.f32.mrf.mxu0
  %167 = vmatprep.mubr.bf16.mxu0 0
  %168 = vmatmul.mubr.bf16.gmra.mxu0 %v102
  %v169 = vpop.f32.mrf.mxu0
  %v170 = vadd.f32 %v40, %v169
  %v171 = vpop.f32.mrf.mxu0
  %v172 = vpop.f32.mrf.mxu0
  %v173 = vadd.f32 %v40, %v172
  %v174 = vpop.f32.mrf.mxu0
  %175 = vmatprep.mubr.bf16.mxu0 0
  %176 = vmatmul.mubr.bf16.gmra.mxu0 %v105
  %v177 = vpop.f32.mrf.mxu0
  %v178 = vadd.f32 %v40, %v177
  %v179 = vpop.f32.mrf.mxu0
  %v180 = vpop.f32.mrf.mxu0
  %v181 = vadd.f32 %v40, %v180
  %v182 = vpop.f32.mrf.mxu0
  %183 = vmatprep.mubr.bf16.mxu0 0
  %184 = vmatmul.mubr.bf16.gmra.mxu0 %v108
  %v185 = vpop.f32.mrf.mxu0
  %v186 = vadd.f32 %v40, %v185
  %v187 = vpop.f32.mrf.mxu0
  %v188 = vpop.f32.mrf.mxu0
  %v189 = vadd.f32 %v40, %v188
  %v190 = vpop.f32.mrf.mxu0
  %191 = vmatprep.mubr.bf16.mxu0 0
  %192 = vmatmul.mubr.bf16.gmra.mxu0 %v111
  %v193 = vpop.f32.mrf.mxu0
  %v194 = vadd.f32 %v40, %v193
  %v195 = vpop.f32.mrf.mxu0
  %v196 = vpop.f32.mrf.mxu0
  %v197 = vadd.f32 %v40, %v196
  %v198 = vpop.f32.mrf.mxu0
  %199 = vmatprep.mubr.bf16.mxu0 0
  %200 = vmatmul.mubr.bf16.gmra.mxu0 %v114
  %v201 = vpop.f32.mrf.mxu0
  %v202 = vadd.f32 %v40, %v201
  %v203 = vpop.f32.mrf.mxu0
  %v204 = vpop.f32.mrf.mxu0
  %v205 = vadd.f32 %v40, %v204
  %v206 = vpop.f32.mrf.mxu0
  %207 = vmatprep.mubr.bf16.mxu0 0
  %208 = vmatmul.mubr.bf16.gmra.mxu0 %v117
  %v209 = vpop.f32.mrf.mxu0
  %v210 = vadd.f32 %v40, %v209
  %v211 = vpop.f32.mrf.mxu0
  %v212 = vpop.f32.mrf.mxu0
  %v213 = vadd.f32 %v40, %v212
  %v214 = vpop.f32.mrf.mxu0
  %215 = vdwg.mxu0
  %v216 = vpack.c.bf16 %v157, %v154
  %v217 = vpack.c.bf16 %v165, %v162
  %v218 = vpack.c.bf16 %v173, %v170
  %v219 = vpack.c.bf16 %v181, %v178
  %v220 = vpack.c.bf16 %v189, %v186
  %v221 = vpack.c.bf16 %v197, %v194
  %v222 = vpack.c.bf16 %v205, %v202
  %v223 = vpack.c.bf16 %v213, %v210
  %v232 = vunpack.c.l.b16 %v216
  %v233 = vunpack.c.h.b16 %v216
  %v234 = vunpack.c.l.b16 %v217
  %v235 = vunpack.c.h.b16 %v217
  %v236 = vunpack.c.l.b16 %v218
  %v237 = vunpack.c.h.b16 %v218
  %v238 = vunpack.c.l.b16 %v219
  %v239 = vunpack.c.h.b16 %v219
  %v240 = vunpack.c.l.b16 %v220
  %v241 = vunpack.c.h.b16 %v220
  %v242 = vunpack.c.l.b16 %v221
  %v243 = vunpack.c.h.b16 %v221
  %v244 = vunpack.c.l.b16 %v222
  %v245 = vunpack.c.h.b16 %v222
  %v246 = vunpack.c.l.b16 %v223
  %v247 = vunpack.c.h.b16 %v223
  %v248 = vpack.c.b16 %v232, %v232
  %v249 = vpack.c.b16 %v233, %v233
  %v250 = vpack.c.b16 %v234, %v234
  %v251 = vpack.c.b16 %v235, %v235
  %v252 = vpack.c.b16 %v236, %v236
  %v253 = vpack.c.b16 %v237, %v237
  %v254 = vpack.c.b16 %v238, %v238
  %v255 = vpack.c.b16 %v239, %v239
  %v256 = vpack.c.b16 %v240, %v240
  %v257 = vpack.c.b16 %v241, %v241
  %v258 = vpack.c.b16 %v242, %v242
  %v259 = vpack.c.b16 %v243, %v243
  %v260 = vpack.c.b16 %v244, %v244
  %v261 = vpack.c.b16 %v245, %v245
  %v262 = vpack.c.b16 %v246, %v246
  %v263 = vpack.c.b16 %v247, %v247
  %vm280 = vcmask 781312
  %281 = vst.msk [vmem:[%s3] sm:$0xf] %vm280, %v248
  %282 = vst.msk [vmem:[%s3 + $0x4] sm:$0xf] %vm280, %v249
  %283 = vst.msk [vmem:[%s3 + $0x8] sm:$0xf] %vm280, %v250
  %284 = vst.msk [vmem:[%s3 + $0xc] sm:$0xf] %vm280, %v251
  %285 = vst.msk [vmem:[%s3 + $0x10] sm:$0xf] %vm280, %v252
  %286 = vst.msk [vmem:[%s3 + $0x14] sm:$0xf] %vm280, %v253
  %287 = vst.msk [vmem:[%s3 + $0x18] sm:$0xf] %vm280, %v254
  %288 = vst.msk [vmem:[%s3 + $0x1c] sm:$0xf] %vm280, %v255
  %289 = vst.msk [vmem:[%s3 + $0x20] sm:$0xf] %vm280, %v256
  %290 = vst.msk [vmem:[%s3 + $0x24] sm:$0xf] %vm280, %v257
  %291 = vst.msk [vmem:[%s3 + $0x28] sm:$0xf] %vm280, %v258
  %292 = vst.msk [vmem:[%s3 + $0x2c] sm:$0xf] %vm280, %v259
  %293 = vst.msk [vmem:[%s3 + $0x30] sm:$0xf] %vm280, %v260
  %294 = vst.msk [vmem:[%s3 + $0x34] sm:$0xf] %vm280, %v261
  %295 = vst.msk [vmem:[%s3 + $0x38] sm:$0xf] %vm280, %v262
  %296 = vst.msk [vmem:[%s3 + $0x3c] sm:$0xf] %vm280, %v263
  // Predicated region
  $region14: #{tpu_custom_call.1} parent=0 // pred_check
    _
  $region15: #{tpu_custom_call.1} parent=0 // pred_check_branch
    %298 = sbr.rel (0) target = $region17
  $region16: #{tpu_custom_call.1} parent=0 // pred_region
    _
  $region17: #{tpu_custom_call.1} parent=0 // pred_fallthru
    _
  // Predicated region
  $region18: #{tpu_custom_call.1} parent=0 // pred_check
    _
  $region19: #{tpu_custom_call.1} parent=0 // pred_check_branch
    %300 = sbr.rel (0) target = $region21
  $region20: #{tpu_custom_call.1} parent=0 // pred_region
    _
  $region21: #{tpu_custom_call.1} parent=0 // pred_fallthru
    _

</llo_original>
